<compile_context>
chip_gen: v7x
topology: tpu7x:2x2x1
jax: 0.10.0
libtpu: 0.0.40
codegen_flags: <defaults>
</compile_context>

<pallas_src>
import numpy as np
import jax
import jax.numpy as jnp
from jax import lax
from jax.experimental import pallas as pl
from jax.experimental.pallas import tpu as pltpu


def _argmax_over_classes_kernel(em_ref, idx_ref):
    """em_ref: (C, TILE_T) emission block; idx_ref: (1, TILE_T) int32 argmax over classes."""
    em = em_ref[...].astype(jnp.float32)            # per-tile upcast, hidden under DMA
    C, Tt = em.shape
    mx = jnp.max(em, axis=0, keepdims=True)         # (1, Tt) sublane reduction
    row = lax.broadcasted_iota(jnp.int32, (C, Tt), 0)
    cand = jnp.where(em == mx, row, jnp.int32(C))   # non-max -> sentinel C
    idx = jnp.min(cand, axis=0, keepdims=True)      # first index on ties (torch semantics)
    idx = jnp.minimum(idx, jnp.int32(C - 1))        # NaN-safety: keep index in range for host gather
    idx_ref[...] = idx.astype(jnp.int32)


def greedy_ctc_argmax(emission: jax.Array, *, tile_t: int = 512) -> jax.Array:
    """Per-timestep argmax over the class axis. emission: (T, C). Returns (T,) int32."""
    T, C = emission.shape
    # Lane-dense layout: time on lanes, classes on sublanes.
    em_t = jnp.transpose(emission)                  # (C, T)
    # TODO(synk): in a real pipeline the acoustic model should emit (C, T) directly to skip this pass.
    tile = T if T <= tile_t else tile_t             # tile_t is a multiple of 128
    grid = (pl.cdiv(T, tile),)

    idx = pl.pallas_call(
        _argmax_over_classes_kernel,
        out_shape=jax.ShapeDtypeStruct((1, T), jnp.int32),
        grid=grid,
        in_specs=[pl.BlockSpec((C, tile), lambda i: (0, i))],
        out_specs=pl.BlockSpec((1, tile), lambda i: (0, i)),
        compiler_params=pltpu.CompilerParams(
            dimension_semantics=("parallel",),      # no cross-tile carry -> shard across v7x's 2 TCs
            vmem_limit_bytes=32 * 1024 * 1024,      # explicit scoped limit (v5e default is 16 MiB)
        ),
        cost_estimate=pl.CostEstimate(
            flops=2 * T * C,
            transcendentals=0,
            bytes_accessed=T * C * emission.dtype.itemsize + T * 4,
        ),
    )(em_t)
    return idx[0]


def greedy_ctc_decode(emission: jax.Array, labels, blank: int = 0) -> str:
    """Pallas-backed equivalent of GreedyCTCDecoder.forward."""
    idx = greedy_ctc_argmax(emission)
    jax.block_until_ready(idx)
    idx_host = np.asarray(jax.device_get(idx))      # (T,)
    # Host-side glue: unique_consecutive + blank removal + string join (ragged / string output).
    keep = np.ones(idx_host.shape[0], dtype=bool)
    keep[1:] = idx_host[1:] != idx_host[:-1]
    uniq = idx_host[keep]
    return "".join(labels[int(i)] for i in uniq if int(i) != blank)


def _reference_decode(emission_f32: np.ndarray, labels, blank=0) -> str:
    """Pure-numpy reference mirroring the PyTorch forward."""
    indices = emission_f32.argmax(axis=-1)
    uniq = [indices[0]] + [indices[t] for t in range(1, len(indices))
                           if indices[t] != indices[t - 1]]
    return "".join(labels[int(i)] for i in uniq if int(i) != blank)


if __name__ == "__main__":
    # Deterministic example: 1024 time steps, 32 classes (class 0 = blank "-").
    labels = ["-"] + [chr(ord("a") + i) for i in range(26)] + ["'", " ", ".", ",", "?"]
    assert len(labels) == 32

    key = jax.random.PRNGKey(0)
    T, C = 1024, 32
    emission = jax.random.normal(key, (T, C), dtype=jnp.float32)
    # log-softmax like a typical CTC emission; feed bf16 straight into the kernel
    # (no wrapper-side f32 cast) to halve HBM traffic on the mem-bound path.
    emission = jax.nn.log_softmax(emission, axis=-1).astype(jnp.bfloat16)

    decoded = greedy_ctc_decode(emission, labels, blank=0)

    # Reference on the exact same bf16-rounded values (upcast to f32 on host).
    ref = _reference_decode(np.asarray(emission.astype(jnp.float32)), labels, blank=0)
    assert decoded == ref, f"mismatch: pallas={decoded!r} ref={ref!r}"

    print("KERNEL_OK")
</pallas_src>

<mosaic_0001>
module attributes {stable_mosaic.version = 11 : i64} {
  func.func @_argmax_over_classes_kernel(%arg0: i32, %arg1: memref<32x512xbf16, #tpu.memory_space<vmem>>, %arg2: memref<1x512xi32, #tpu.memory_space<vmem>>) attributes {dimension_semantics = [#tpu.dimension_semantics<parallel>], iteration_bounds = array<i64: 2>, scalar_prefetch = 0 : i64, scratch_operands = 0 : i64, tpu.core_type = #tpu.core_type<tc>, window_params = [{transform_indices = @transform_0, window_bounds = array<i64: 32, 512>}, {transform_indices = @transform_1, window_bounds = array<i64: 1, 512>}]} {
    %c0 = arith.constant 0 : index
    %c0_0 = arith.constant 0 : index
    %0 = vector.load %arg1[%c0, %c0_0] : memref<32x512xbf16, #tpu.memory_space<vmem>>, vector<32x512xbf16>
    %1 = arith.extf %0 : vector<32x512xbf16> to vector<32x512xf32>
    %cst = arith.constant dense<0xFF800000> : vector<512xf32>
    %2 = vector.multi_reduction <maximumf>, %1, %cst [0] : vector<32x512xf32> to vector<512xf32>
    %3 = vector.shape_cast %2 : vector<512xf32> to vector<1x512xf32>
    %4 = tpu.iota {dimensions = array<i32: 0>} : vector<32x512xi32>
    %5 = vector.broadcast %3 : vector<1x512xf32> to vector<32x512xf32>
    %6 = arith.cmpf oeq, %1, %5 : vector<32x512xf32>
    %c32_i32 = arith.constant 32 : i32
    %7 = vector.broadcast %c32_i32 : i32 to vector<32x512xi32>
    %8 = arith.select %6, %4, %7 : vector<32x512xi1>, vector<32x512xi32>
    %cst_1 = arith.constant dense<2147483647> : vector<512xi32>
    %9 = vector.multi_reduction <minsi>, %8, %cst_1 [0] : vector<32x512xi32> to vector<512xi32>
    %10 = vector.shape_cast %9 : vector<512xi32> to vector<1x512xi32>
    %c31_i32 = arith.constant 31 : i32
    %11 = vector.broadcast %c31_i32 : i32 to vector<1x512xi32>
    %12 = arith.minsi %10, %11 : vector<1x512xi32>
    %c0_2 = arith.constant 0 : index
    %c0_3 = arith.constant 0 : index
    %13 = vector.load %arg2[%c0_2, %c0_3] : memref<1x512xi32, #tpu.memory_space<vmem>>, vector<1x512xi32>
    tpu.vector_store %arg2[%c0_2, %c0_3], %12 {strides = array<i32>} : memref<1x512xi32, #tpu.memory_space<vmem>>, vector<1x512xi32>,
    return
  }
  func.func @transform_0(%arg0: i32) -> (i32, i32) {
    %c0_i32 = arith.constant 0 : i32
    %c0_i32_0 = arith.constant 0 : i32
    return %c0_i32, %arg0 : i32, i32
  }
  func.func @transform_1(%arg0: i32) -> (i32, i32) {
    %c0_i32 = arith.constant 0 : i32
    %c0_i32_0 = arith.constant 0 : i32
    return %c0_i32, %arg0 : i32, i32
  }
}

</mosaic_0001>

<llo_original>
// kernel: tpu_custom_call.1
$region0: #{tpu_custom_call.1}
  #allocation0 [shape = 'u32[]', space=smem, size = 0x4, offset = 0x4, fixed_abs, tag = 'smem constant byte address 0x4 - core index']
  #allocation1 [shape = 'u32[144,128]{1,0:T(1,128)}', space=vmem, size = 0x12000, scoped, tag = 'internal scratch']
  %s0 = inlined_call_operand.hbm [shape: bf16[32,1024], index: 0, kind: input, shape index: {}]
  %s1 = inlined_call_operand.hbm [shape: s32[1,1024], index: 1, kind: output, shape index: {}]
  %s2 = sld [smem:[#allocation0]]
  $region41: #{tpu_custom_call.1} parent=0
    _
  %s4 = ssub.s32 1, %s2
  %s5 = scalar_select 0, %s4, %s2
  $region1: #{tpu_custom_call.1} parent=0
    #allocation2 [shape = 'u8[65536]{0}', space=vmem, size = 0x10000, scoped, tag = 'input window, operand 0']
    #allocation3 [shape = 's32[2]{0}', space=sflag, size = 0x8, scoped, tag = 'scoped memory for tpu_custom_call.1']
    #allocation4 [shape = 's32[2]{0}', space=sflag, size = 0x8, scoped, tag = 'scoped memory for tpu_custom_call.1']
    #allocation5 [shape = 'u8[4096]{0}', space=vmem, size = 0x1000, scoped, tag = 'output window, operand 0']
    %6 = vsyncpa [#allocation3], 0
    %s7 = scalar_lea.sflag [#allocation3], 1
    %8 = vsyncpa %s7, 0
    %9 = vsyncpa [#allocation4], 0
    %s10 = scalar_lea.sflag [#allocation4], 1
    %11 = vsyncpa %s10, 0
    loop: start=0, step=1, limit=4
    $region2: #{tpu_custom_call.1} parent=1 // loop_pre_header
      _
    $region3: #{tpu_custom_call.1} parent=1 // loop_header
      %s13 = sphi 0, %s17
      %p14 = scmp.ge.s32.totalorder %s13, 4
      %s23 = sphi 0, %s25
      %s26 = sphi 0, %s23
      %s27 = sphi 0, %s26
      %s43 = sphi 0, %s27
      %s49 = sphi 0, %s51
      %s52 = sphi 0, %s49
      %s53 = sphi 0, %s52
      %s69 = sphi 0, %s53
    $region4: #{tpu_custom_call.1} parent=1 // loop_header_branch
      %16 = sbr.rel (%p14) target = $region8
    $region5: #{tpu_custom_call.1} parent=1 // loop_body
      %s18 = ssub.s32 %s13, 1
      %s19 = ssub.s32 %s13, 2
      %s20 = sadd.s32 %s13, 1
      %s21 = ssub.s32 %s13, %s20
      %p22 = scmp.eq.s32.totalorder %s21, 0
      %s24 = sadd.s32 %s23, 1
      %s25 = scalar_select %p22, %s23, %s24
      %p28 = pneg %p22
      %p29 = scmp.eq.s32.totalorder %s13, 1
      %p30 = por %p28, %p29
      %p31 = scmp.ne.s32.totalorder %s23, %s26
      %p32 = scmp.eq.s32.totalorder %s13, 0
      %p33 = por %p31, %p32
      %p34 = scmp.ne.s32.totalorder %s23, %s26
      %p35 = scmp.eq.s32.totalorder %s18, 1
      %p36 = por %p34, %p35
      %p37 = scmp.ne.s32.totalorder %s26, %s27
      %p38 = scmp.eq.s32.totalorder %s18, 0
      %p39 = por %p37, %p38
      %p40 = scmp.ne.s32.totalorder %s26, %s27
      %p41 = scmp.eq.s32.totalorder %s19, 1
      %p42 = por %p40, %p41
      %p44 = scmp.ne.s32.totalorder %s27, %s43
      %p45 = scmp.eq.s32.totalorder %s19, 0
      %p46 = por %p44, %p45
      %s47 = ssub.s32 %s13, %s20
      %p48 = scmp.eq.s32.totalorder %s47, 0
      %s50 = sadd.s32 %s49, 1
      %s51 = scalar_select %p48, %s49, %s50
      %p54 = pneg %p48
      %p55 = scmp.eq.s32.totalorder %s13, 1
      %p56 = por %p54, %p55
      %p57 = scmp.ne.s32.totalorder %s49, %s52
      %p58 = scmp.eq.s32.totalorder %s13, 0
      %p59 = por %p57, %p58
      %p60 = scmp.ne.s32.totalorder %s49, %s52
      %p61 = scmp.eq.s32.totalorder %s18, 1
      %p62 = por %p60, %p61
      %p63 = scmp.ne.s32.totalorder %s52, %s53
      %p64 = scmp.eq.s32.totalorder %s18, 0
      %p65 = por %p63, %p64
      %p66 = scmp.ne.s32.totalorder %s52, %s53
      %p67 = scmp.eq.s32.totalorder %s19, 1
      %p68 = por %p66, %p67
      %p70 = scmp.ne.s32.totalorder %s53, %s69
      %p71 = scmp.eq.s32.totalorder %s19, 0
      %p72 = por %p70, %p71
      %p73 = scmp.le.s32.totalorder 1, %s13
      %p74 = scmp.lt.s32.totalorder %s13, 3
      %p75 = pnand %p73, %p74
      %p76 = pneg %p75
      // Predicated region
      $region9: #{tpu_custom_call.1} parent=5 // pred_check
        _
      $region10: #{tpu_custom_call.1} parent=5 // pred_check_branch
        %78 = sbr.rel (%p75) target = $region12
      $region11: #{tpu_custom_call.1} parent=5 // pred_region
        %s79 = ssub.s32 %s13, 1
      $region12: #{tpu_custom_call.1} parent=5 // pred_fallthru
        _
      %p80 = scmp.lt.s32.totalorder %s13, 2
      // Predicated region
      $region13: #{tpu_custom_call.1} parent=5 // pred_check
        %p81 = pneg %p80
      $region14: #{tpu_custom_call.1} parent=5 // pred_check_branch
        %83 = sbr.rel (%p81) target = $region16
      $region15: #{tpu_custom_call.1} parent=5 // pred_region
        // Predicated region
        $region17: #{tpu_custom_call.1} parent=15 // pred_check
          %p84 = pneg %p33
        $region18: #{tpu_custom_call.1} parent=15 // pred_check_branch
          %86 = sbr.rel (%p84) target = $region20
        $region19: #{tpu_custom_call.1} parent=15 // pred_region
          %s87 = sand.u32 %s23, 1
          %s88 = scalar_lea.sflag [#allocation3], %s87
          %s89 = sand.u32 %s23, 1
          %s90 = smul.addr %s89, 64
          %s91 = scalar_lea.vmem [#allocation2], %s90
          %s92 = smul.u32 4, %s13
          %s94 = ssub.s32 1024, 1024
          %95 = vsyncadd %s88, %s94
          %s96 = smul.addr %s92, 64
          %s97 = scalar_lea.hbm %s0, %s96
          %s98 = sshll.u32 %s91, 4
          %s99 = int_to_ptr.vmem [resolvable:$true] %s98
          %104 = dma.hbm_to_vmem [thread:$0]  %s97, 1024, %s99, %s88, 512, 256, 16
        $region20: #{tpu_custom_call.1} parent=15 // pred_fallthru
          _
      $region16: #{tpu_custom_call.1} parent=5 // pred_fallthru
        _
      %p105 = scmp.le.s32.totalorder 1, %s13
      %p106 = scmp.lt.s32.totalorder %s13, 3
      %p107 = pnand %p105, %p106
      %p108 = pneg %p107
      // Predicated region
      $region21: #{tpu_custom_call.1} parent=5 // pred_check
        _
      $region22: #{tpu_custom_call.1} parent=5 // pred_check_branch
        %110 = sbr.rel (%p107) target = $region24
      $region23: #{tpu_custom_call.1} parent=5 // pred_region
        %s111 = ssub.s32 %s13, 1
        %s112 = sand.u32 %s26, 1
        %s113 = scalar_lea.sflag [#allocation3], %s112
        %s114 = sand.u32 %s26, 1
        %s115 = smul.addr %s114, 64
        %s116 = scalar_lea.vmem [#allocation2], %s115
        // Predicated region
        $region25: #{tpu_custom_call.1} parent=23 // pred_check
          %p117 = pneg %p39
        $region26: #{tpu_custom_call.1} parent=23 // pred_check_branch
          %119 = sbr.rel (%p117) target = $region28
        $region27: #{tpu_custom_call.1} parent=23 // pred_region
          %120 = dma.done %s113, 1024
        $region28: #{tpu_custom_call.1} parent=23 // pred_fallthru
          _
        %s121 = sand.u32 %s26, 1
        %s122 = scalar_lea.sflag [#allocation3], %s121
        %s123 = sand.u32 %s26, 1
        %s124 = smul.addr %s123, 64
        %s125 = scalar_lea.vmem [#allocation2], %s124
        %p126 = pneg %p39
        %p127 = pneg %p36
        %p128 = pneg %p65
        %p129 = pneg %p62
        %s130 = sand.u32 %s52, 1
        %s131 = scalar_lea.sflag [#allocation4], %s130
        %s132 = sand.u32 %s52, 1
        %s133 = smul.addr %s132, 4
        %s134 = scalar_lea.vmem [#allocation5], %s133
        %s135 = smul.u32 4, %s18
        %s136 = smul.u32 4, %s18
        %v137 = vld [vmem:[%s116] sm:$0xff]
        %v138 = vld [vmem:[%s116 + $0x8] sm:$0xff]
        %v139 = vld [vmem:[%s116 + $0x10] sm:$0xff]
        %v140 = vld [vmem:[%s116 + $0x18] sm:$0xff]
        %v141 = vld [vmem:[%s116 + $0x20] sm:$0xff]
        %v142 = vld [vmem:[%s116 + $0x28] sm:$0xff]
        %v143 = vld [vmem:[%s116 + $0x30] sm:$0xff]
        %v144 = vld [vmem:[%s116 + $0x38] sm:$0xff]
        %v145 = vunpack.c.l.bf16 %v137
        %v146 = vunpack.c.h.bf16 %v137
        %v147 = vunpack.c.l.bf16 %v138
        %v148 = vunpack.c.h.bf16 %v138
        %v149 = vunpack.c.l.bf16 %v139
        %v150 = vunpack.c.h.bf16 %v139
        %v151 = vunpack.c.l.bf16 %v140
        %v152 = vunpack.c.h.bf16 %v140
        %v153 = vunpack.c.l.bf16 %v141
        %v154 = vunpack.c.h.bf16 %v141
        %v155 = vunpack.c.l.bf16 %v142
        %v156 = vunpack.c.h.bf16 %v142
        %v157 = vunpack.c.l.bf16 %v143
        %v158 = vunpack.c.h.bf16 %v143
        %v159 = vunpack.c.l.bf16 %v144
        %v160 = vunpack.c.h.bf16 %v144
        %v161 = vmax.f32 %v145, %v149
        %v162 = vmax.f32 %v161, %v153
        %v163 = vmax.f32 %v162, %v157
        %v164 = vrot.slane %v163, 4
        %v165 = vmax.f32 %v163, %v164
        %v166 = vrot.slane %v165, 2
        %v167 = vmax.f32 %v165, %v166
        %v168 = vrot.slane %v167, 1
        %v169 = vmax.f32 %v167, %v168
        %v170 = vmax.f32 %v146, %v150
        %v171 = vmax.f32 %v170, %v154
        %v172 = vmax.f32 %v171, %v158
        %v173 = vrot.slane %v172, 4
        %v174 = vmax.f32 %v172, %v173
        %v175 = vrot.slane %v174, 2
        %v176 = vmax.f32 %v174, %v175
        %v177 = vrot.slane %v176, 1
        %v178 = vmax.f32 %v176, %v177
        %v179 = vmax.f32 %v147, %v151
        %v180 = vmax.f32 %v179, %v155
        %v181 = vmax.f32 %v180, %v159
        %v182 = vrot.slane %v181, 4
        %v183 = vmax.f32 %v181, %v182
        %v184 = vrot.slane %v183, 2
        %v185 = vmax.f32 %v183, %v184
        %v186 = vrot.slane %v185, 1
        %v187 = vmax.f32 %v185, %v186
        %v188 = vmax.f32 %v148, %v152
        %v189 = vmax.f32 %v188, %v156
        %v190 = vmax.f32 %v189, %v160
        %v191 = vrot.slane %v190, 4
        %v192 = vmax.f32 %v190, %v191
        %v193 = vrot.slane %v192, 2
        %v194 = vmax.f32 %v192, %v193
        %v195 = vrot.slane %v194, 1
        %v196 = vmax.f32 %v194, %v195
        %v197 = vlaneseq
        %v198 = vshrl.u32 %v197, 7
        %v199 = vadd.s32 %v198, 8
        %v200 = vadd.s32 %v198, 16
        %v201 = vadd.s32 %v198, 24
        %vm202 = vcmp.eq.f32.partialorder %v145, %v169
        %vm203 = vcmp.eq.f32.partialorder %v146, %v178
        %vm204 = vcmp.eq.f32.partialorder %v147, %v187
        %vm205 = vcmp.eq.f32.partialorder %v148, %v196
        %vm206 = vcmp.eq.f32.partialorder %v149, %v169
        %vm207 = vcmp.eq.f32.partialorder %v150, %v178
        %vm208 = vcmp.eq.f32.partialorder %v151, %v187
        %vm209 = vcmp.eq.f32.partialorder %v152, %v196
        %vm210 = vcmp.eq.f32.partialorder %v153, %v169
        %vm211 = vcmp.eq.f32.partialorder %v154, %v178
        %vm212 = vcmp.eq.f32.partialorder %v155, %v187
        %vm213 = vcmp.eq.f32.partialorder %v156, %v196
        %vm214 = vcmp.eq.f32.partialorder %v157, %v169
        %vm215 = vcmp.eq.f32.partialorder %v158, %v178
        %vm216 = vcmp.eq.f32.partialorder %v159, %v187
        %vm217 = vcmp.eq.f32.partialorder %v160, %v196
        %v218 = vsel %vm202, %v198, 32
        %v219 = vsel %vm203, %v198, 32
        %v220 = vsel %vm204, %v198, 32
        %v221 = vsel %vm205, %v198, 32
        %v222 = vsel %vm206, %v199, 32
        %v223 = vsel %vm207, %v199, 32
        %v224 = vsel %vm208, %v199, 32
        %v225 = vsel %vm209, %v199, 32
        %v226 = vsel %vm210, %v200, 32
        %v227 = vsel %vm211, %v200, 32
        %v228 = vsel %vm212, %v200, 32
        %v229 = vsel %vm213, %v200, 32
        %v230 = vsel %vm214, %v201, 32
        %v231 = vsel %vm215, %v201, 32
        %v232 = vsel %vm216, %v201, 32
        %v233 = vsel %vm217, %v201, 32
        %vm234 = vcmp.lt.s32.totalorder %v218, %v222
        %v235 = vsel %vm234, %v218, %v222
        %vm236 = vcmp.lt.s32.totalorder %v235, %v226
        %v237 = vsel %vm236, %v235, %v226
        %vm238 = vcmp.lt.s32.totalorder %v237, %v230
        %v239 = vsel %vm238, %v237, %v230
        %v240 = vrot.slane %v239, 4
        %vm241 = vcmp.lt.s32.totalorder %v239, %v240
        %v242 = vsel %vm241, %v239, %v240
        %v243 = vrot.slane %v242, 2
        %vm244 = vcmp.lt.s32.totalorder %v242, %v243
        %v245 = vsel %vm244, %v242, %v243
        %v246 = vrot.slane %v245, 1
        %vm247 = vcmp.lt.s32.totalorder %v245, %v246
        %v248 = vsel %vm247, %v245, %v246
        %vm249 = vcmp.lt.s32.totalorder %v219, %v223
        %v250 = vsel %vm249, %v219, %v223
        %vm251 = vcmp.lt.s32.totalorder %v250, %v227
        %v252 = vsel %vm251, %v250, %v227
        %vm253 = vcmp.lt.s32.totalorder %v252, %v231
        %v254 = vsel %vm253, %v252, %v231
        %v255 = vrot.slane %v254, 4
        %vm256 = vcmp.lt.s32.totalorder %v254, %v255
        %v257 = vsel %vm256, %v254, %v255
        %v258 = vrot.slane %v257, 2
        %vm259 = vcmp.lt.s32.totalorder %v257, %v258
        %v260 = vsel %vm259, %v257, %v258
        %v261 = vrot.slane %v260, 1
        %vm262 = vcmp.lt.s32.totalorder %v260, %v261
        %v263 = vsel %vm262, %v260, %v261
        %vm264 = vcmp.lt.s32.totalorder %v220, %v224
        %v265 = vsel %vm264, %v220, %v224
        %vm266 = vcmp.lt.s32.totalorder %v265, %v228
        %v267 = vsel %vm266, %v265, %v228
        %vm268 = vcmp.lt.s32.totalorder %v267, %v232
        %v269 = vsel %vm268, %v267, %v232
        %v270 = vrot.slane %v269, 4
        %vm271 = vcmp.lt.s32.totalorder %v269, %v270
        %v272 = vsel %vm271, %v269, %v270
        %v273 = vrot.slane %v272, 2
        %vm274 = vcmp.lt.s32.totalorder %v272, %v273
        %v275 = vsel %vm274, %v272, %v273
        %v276 = vrot.slane %v275, 1
        %vm277 = vcmp.lt.s32.totalorder %v275, %v276
        %v278 = vsel %vm277, %v275, %v276
        %vm279 = vcmp.lt.s32.totalorder %v221, %v225
        %v280 = vsel %vm279, %v221, %v225
        %vm281 = vcmp.lt.s32.totalorder %v280, %v229
        %v282 = vsel %vm281, %v280, %v229
        %vm283 = vcmp.lt.s32.totalorder %v282, %v233
        %v284 = vsel %vm283, %v282, %v233
        %v285 = vrot.slane %v284, 4
        %vm286 = vcmp.lt.s32.totalorder %v284, %v285
        %v287 = vsel %vm286, %v284, %v285
        %v288 = vrot.slane %v287, 2
        %vm289 = vcmp.lt.s32.totalorder %v287, %v288
        %v290 = vsel %vm289, %v287, %v288
        %v291 = vrot.slane %v290, 1
        %vm292 = vcmp.lt.s32.totalorder %v290, %v291
        %v293 = vsel %vm292, %v290, %v291
        %vm294 = vcmp.lt.s32.totalorder %v248, 31
        %v295 = vsel %vm294, %v248, 31
        %vm296 = vcmp.lt.s32.totalorder %v263, 31
        %v297 = vsel %vm296, %v263, 31
        %vm298 = vcmp.lt.s32.totalorder %v278, 31
        %v299 = vsel %vm298, %v278, 31
        %vm300 = vcmp.lt.s32.totalorder %v293, 31
        %v301 = vsel %vm300, %v293, 31
        %v302 = vcombine.low %v295, %v297
        %v303 = vcombine.low %v299, %v301
        %v305 = vunpack.c.l.s4 1966171168
        %v306 = vunpack.c.0.s8 %v305
        %v307 = vlaneseq
        %v308 = vshrl.u32 %v307, 7
        %v309 = vsub.s32 %v306, %v308
        %v310 = vrot.slane %v302, %v309
        %v312 = vunpack.c.l.s4 1966171168
        %v313 = vunpack.c.0.s8 %v312
        %v314 = vlaneseq
        %v315 = vshrl.u32 %v314, 7
        %v316 = vsub.s32 %v313, %v315
        %v317 = vrot.slane %v303, %v316
        %v318 = vcombine.low %v310, %v317
        %v320 = vunpack.c.l.s4 1966171168
        %v321 = vunpack.c.0.s8 %v320
        %v322 = vlaneseq
        %v323 = vshrl.u32 %v322, 7
        %v324 = vsub.s32 %v321, %v323
        %v325 = vrot.slane %v318, %v324
        %v326 = vlaneseq
        %vm327 = vcmp.ge.s32.totalorder %v326, 0
        %vm328 = vcmp.lt.s32.totalorder %v326, 512
        %vm329 = vmand %vm327, %vm328
        %330 = vst.msk [vmem:[%s134] sm:$0xf] %vm329, %v325
        %s331 = sand.u32 %s52, 1
        %s332 = scalar_lea.sflag [#allocation4], %s331
        %s333 = sand.u32 %s52, 1
        %s334 = smul.addr %s333, 4
        %s335 = scalar_lea.vmem [#allocation5], %s334
        // Predicated region
        $region29: #{tpu_custom_call.1} parent=23 // pred_check
          %p336 = pneg %p62
        $region30: #{tpu_custom_call.1} parent=23 // pred_check_branch
          %338 = sbr.rel (%p336) target = $region32
        $region31: #{tpu_custom_call.1} parent=23 // pred_region
          %s339 = smul.u32 4, %s18
          %s341 = ssub.s32 64, 64
          %342 = vsyncadd %s332, %s341
          %s343 = smul.addr %s339, 16
          %s344 = scalar_lea.hbm %s1, %s343
          %s346 = sshll.u32 %s335, 4
          %s347 = int_to_ptr.vmem [resolvable:$true] %s346
          %349 = dma.vmem_to_hbm [thread:$0]  %s347, 64, %s344, %s332
        $region32: #{tpu_custom_call.1} parent=23 // pred_fallthru
          _
      $region24: #{tpu_custom_call.1} parent=5 // pred_fallthru
        _
      %p350 = scmp.le.s32.totalorder 2, %s13
      // Predicated region
      $region33: #{tpu_custom_call.1} parent=5 // pred_check
        %p351 = pneg %p350
      $region34: #{tpu_custom_call.1} parent=5 // pred_check_branch
        %353 = sbr.rel (%p351) target = $region36
      $region35: #{tpu_custom_call.1} parent=5 // pred_region
        %s354 = ssub.s32 %s13, 2
        // Predicated region
        $region37: #{tpu_custom_call.1} parent=35 // pred_check
          %p355 = pneg %p68
        $region38: #{tpu_custom_call.1} parent=35 // pred_check_branch
          %357 = sbr.rel (%p355) target = $region40
        $region39: #{tpu_custom_call.1} parent=35 // pred_region
          %s358 = sand.u32 %s53, 1
          %s359 = scalar_lea.sflag [#allocation4], %s358
          %s360 = sand.u32 %s53, 1
          %s361 = smul.addr %s360, 4
          %s362 = scalar_lea.vmem [#allocation5], %s361
          %363 = dma.done %s359, 64
        $region40: #{tpu_custom_call.1} parent=35 // pred_fallthru
          _
      $region36: #{tpu_custom_call.1} parent=5 // pred_fallthru
        _
    $region6: #{tpu_custom_call.1} parent=1 // loop_footer
      %s17 = sadd.s32 1, %s13
    $region7: #{tpu_custom_call.1} parent=1 // loop_footer_branch
      %12 = sbr.rel target = $region3
    $region8: #{tpu_custom_call.1} parent=1 // loop_exit
      _
    %364 = vsyncpa [#allocation3], 1
    %s365 = scalar_lea.sflag [#allocation3], 1
    %366 = vsyncpa %s365, 1
    %367 = vsyncpa [#allocation4], 1
    %s368 = scalar_lea.sflag [#allocation4], 1
    %369 = vsyncpa %s368, 1

</llo_original>
